<compile_context>
chip_gen: v5e
topology: v5e:2x2
jax: 0.10.0
libtpu: 0.0.40
codegen_flags: <defaults>
</compile_context>

<pallas_src>
import functools

import jax
import jax.numpy as jnp
from jax import lax
from jax.experimental import pallas as pl
from jax.experimental.pallas import tpu as pltpu

K = 3              # MaxPool2d(kernel_size=3) -> stride=3, padding=0, ceil_mode=True
_LANE = 128
_MIB = 1 << 20

_TARGET_IN_BYTES = 3 * _MIB   # padded-input sweet spot per grid step (1-4 MiB band)
_MIN_IN_BYTES = 1 * _MIB      # never shrink blocks below this just for step count


def _round_up(x, m):
    return -(-x // m) * m


def _sublane_multiple(itemsize):
    # Second-minor VMEM tile: 8 (4-byte), 16 (2-byte), 32 (1-byte) sublanes.
    return max(8, 32 // int(itemsize))


def _max_identity(dtype):
    """Identity element for max, used to fill ragged ceil_mode windows."""
    if jnp.issubdtype(dtype, jnp.floating):
        return float("-inf")
    if jnp.issubdtype(dtype, jnp.integer):
        return int(jnp.iinfo(dtype).min)
    raise NotImplementedError(f"maxpool: unsupported dtype {dtype}")


def _chip_info():
    """(physical VMEM bytes, #TensorCores per device) with safe fallbacks."""
    kind = ""
    try:
        kind = jax.devices()[0].device_kind.lower()
    except Exception:
        pass
    vmem = None
    try:
        vmem = getattr(pltpu.get_tpu_info(), "vmem_capacity_bytes", None)
    except Exception:
        pass
    if not vmem:
        vmem = 64 * _MIB if "v7" in kind else 128 * _MIB
    cores = 2 if any(t in kind for t in ("v7", "v4", "v5p")) else 1
    return int(vmem), cores


def _plan(nc, h, w, ho, wo, itemsize):
    """Choose (nc_blk, ho_blk, h_blk, nh, vmem_limit) from padded footprints."""
    sub = _sublane_multiple(itemsize)
    w_pad = _round_up(w, _LANE) * itemsize     # padded bytes of one input row
    wo_pad = _round_up(wo, _LANE) * itemsize   # padded bytes of one output row
    vmem_phys, num_tc = _chip_info()
    usable = min(int(vmem_phys * 0.75), vmem_phys - 8 * _MIB)

    def step_budget(nc_blk, h_blk, ho_blk):
        # 2x double-buffered input + ~1 input block of in-kernel intermediates
        # + 2x double-buffered output + slack, all on padded (tile) footprints.
        in_pad = nc_blk * _round_up(h_blk, sub) * w_pad
        out_pad = nc_blk * _round_up(ho_blk, sub) * wo_pad
        return 3 * in_pad + 2 * out_pad + 2 * _MIB

    # ---- H tiling: only when even a single full plane overflows the budget.
    if step_budget(1, h, ho) <= usable:
        ho_blk, h_blk = ho, h                   # block spans the whole plane
    else:
        # ho_blk multiple of 32 -> h_blk multiple of 96: divisible by the
        # (8/16/32, 128) tile for every dtype, so partial trailing blocks are OK.
        ho_blk = 32
        while True:
            nxt = ho_blk + 32
            if (nxt >= ho
                    or _round_up(nxt * K, sub) * w_pad > _TARGET_IN_BYTES
                    or step_budget(1, nxt * K, nxt) > usable):
                break
            ho_blk = nxt
        h_blk = ho_blk * K
        if h_blk >= h:
            # Degenerate (huge-W, tiny-H) case: keep the full plane.  A W-tiling
            # axis would be needed to shrink further; not worth it here.
            ho_blk, h_blk = ho, h
    nh = -(-ho // ho_blk)

    # ---- N*C blocking: target-sized padded blocks, enough steps to pipeline.
    per_in = _round_up(h_blk, sub) * w_pad
    per_out = _round_up(ho_blk, sub) * wo_pad
    nc_fit = max(1, (usable - 2 * _MIB) // (3 * per_in + 2 * per_out))
    nc_target = max(1, _TARGET_IN_BYTES // per_in)
    nc_blk = max(1, min(nc, nc_fit, nc_target))

    min_steps = 8 if num_tc >= 2 else 4
    if (-(-nc // nc_blk)) * nh < min_steps:
        nc_steps_wanted = max(1, -(-min_steps // nh))
        nc_blk_for_steps = max(1, -(-nc // nc_steps_wanted))
        nc_floor = max(1, _MIN_IN_BYTES // per_in)
        nc_blk = min(nc_blk, max(nc_blk_for_steps, nc_floor))

    vmem_limit = int(min(max(step_budget(nc_blk, h_blk, ho_blk), 32 * _MIB),
                         int(vmem_phys * 0.9)))
    return nc_blk, ho_blk, h_blk, nh, vmem_limit


def _maxpool_kernel(x_ref, o_ref, *, true_h, fill):
    # x_ref: (nc_blk, h_blk, W)   o_ref: (nc_blk, ho_blk, Wo)
    _, hb, w = x_ref.shape
    ob, wo = o_ref.shape[1], o_ref.shape[2]
    full = hb // K            # number of complete 3-row window groups in block

    def wreduce(rows_val):
        # Max over lane groups of K on the (already H-reduced) value; ceil_mode
        # ragged last column is padded with the max identity (<=2 lanes).
        n_, r_, w_ = rows_val.shape
        wp = wo * K
        if wp != w_:
            pad = jnp.full((n_, r_, wp - w_), fill, rows_val.dtype)
            rows_val = jnp.concatenate([rows_val, pad], axis=2)
        return jnp.max(rows_val.reshape(n_, r_, wo, K), axis=3)

    parts = []
    if full > 0:
        # Stage 1: H-window max via sublane-strided loads (no relayout, no
        # block-sized copies).
        r0 = x_ref[:, pl.ds(0, full, stride=K), :]
        r1 = x_ref[:, pl.ds(1, full, stride=K), :]
        r2 = x_ref[:, pl.ds(2, full, stride=K), :]
        if true_h % K != 0 and hb == ob * K:
            # H-tiled & ragged: rows at/after the true H in the trailing H block
            # are uninitialized block padding -> replace with the max identity.
            orow = (pl.program_id(1) * ob
                    + lax.broadcasted_iota(jnp.int32, (1, full, w), 1))
            if true_h % K == 1:
                r1 = jnp.where(orow * K + 1 < true_h, r1, fill)
            r2 = jnp.where(orow * K + 2 < true_h, r2, fill)
        parts.append(wreduce(jnp.maximum(jnp.maximum(r0, r1), r2)))
    if ob > full:
        # Un-tiled plane with ceil_mode ragged last row window: 1-2 valid rows.
        rem = hb - full * K
        tail = x_ref[:, pl.ds(full * K, rem), :]
        parts.append(wreduce(jnp.max(tail, axis=1, keepdims=True)))

    out = parts[0] if len(parts) == 1 else jnp.concatenate(parts, axis=1)
    o_ref[...] = out.astype(o_ref.dtype)


def maxpool2d_k3_ceil(x):
    """MaxPool2d(kernel_size=3, stride=3, padding=0, ceil_mode=True) on NCHW."""
    n, c, h, w = x.shape
    ho, wo = -(-h // K), -(-w // K)
    nc = n * c
    itemsize = jnp.dtype(x.dtype).itemsize
    fill = _max_identity(x.dtype)

    nc_blk, ho_blk, h_blk, nh, vmem_limit = _plan(nc, h, w, ho, wo, itemsize)
    grid = (pl.cdiv(nc, nc_blk), nh)

    kernel = functools.partial(_maxpool_kernel, true_h=h, fill=fill)
    x3 = x.reshape(nc, h, w)   # metadata-only reshape for contiguous NCHW

    out = pl.pallas_call(
        kernel,
        out_shape=jax.ShapeDtypeStruct((nc, ho, wo), x.dtype),
        grid=grid,
        in_specs=[pl.BlockSpec((nc_blk, h_blk, w), lambda i, j: (i, j, 0))],
        out_specs=pl.BlockSpec((nc_blk, ho_blk, wo), lambda i, j: (i, j, 0)),
        compiler_params=pltpu.CompilerParams(
            dimension_semantics=("parallel", "parallel"),
            vmem_limit_bytes=vmem_limit,
        ),
        cost_estimate=pl.CostEstimate(
            flops=nc * h * w,                  # ~1 compare per loaded element
            transcendentals=0,
            bytes_accessed=(nc * h * w + nc * ho * wo) * itemsize,
        ),
    )(x3)
    return out.reshape(n, c, ho, wo)


class MyNN:
    """JAX/Pallas port of the PyTorch myNN module (a single MaxPool2d layer)."""

    def __init__(self):
        # MaxPool2d has no learnable parameters -> nothing to initialize.
        self._fn = jax.jit(maxpool2d_k3_ceil)

    def __call__(self, x):
        return self._fn(x)


def _reference(x):
    # Pure-JAX reference with identical ceil_mode semantics (float inputs).
    n, c, h, w = x.shape
    ho, wo = -(-h // K), -(-w // K)
    return lax.reduce_window(
        x, -jnp.inf, lax.max,
        window_dimensions=(1, 1, K, K),
        window_strides=(1, 1, K, K),
        padding=((0, 0), (0, 0), (0, ho * K - h), (0, wo * K - w)),
    )


if __name__ == "__main__":
    key = jax.random.PRNGKey(0)
    x = jax.random.normal(key, (2, 4, 16, 16), dtype=jnp.float32)

    model = MyNN()
    out = jax.block_until_ready(model(x))

    assert out.shape == (2, 4, 6, 6), out.shape  # ceil(16/3) = 6
    ref = jax.block_until_ready(_reference(x))
    assert jnp.array_equal(out, ref), "Pallas maxpool mismatch vs reference"

    print("KERNEL_OK")
</pallas_src>

<mosaic_0001>
module attributes {stable_mosaic.version = 11 : i64} {
  func.func @_maxpool_kernel(%arg0: i32, %arg1: i32, %arg2: memref<8x16x16xf32, #tpu.memory_space<vmem>>, %arg3: memref<8x6x6xf32, #tpu.memory_space<vmem>>) attributes {dimension_semantics = [#tpu.dimension_semantics<parallel>, #tpu.dimension_semantics<parallel>], iteration_bounds = array<i64: 1, 1>, scalar_prefetch = 0 : i64, scratch_operands = 0 : i64, tpu.core_type = #tpu.core_type<tc>, window_params = [{transform_indices = @transform_0, window_bounds = array<i64: 8, 16, 16>}, {transform_indices = @transform_1, window_bounds = array<i64: 8, 6, 6>}]} {
    %c0 = arith.constant 0 : index
    %c0_0 = arith.constant 0 : index
    %c0_1 = arith.constant 0 : index
    %0 = tpu.strided_load %arg2[%c0, %c0_0, %c0_1] {strides = array<i32: 1, 3, 1>} : memref<8x16x16xf32, #tpu.memory_space<vmem>>, vector<8x5x16xf32>
    %c0_2 = arith.constant 0 : index
    %c1 = arith.constant 1 : index
    %c0_3 = arith.constant 0 : index
    %1 = tpu.strided_load %arg2[%c0_2, %c1, %c0_3] {strides = array<i32: 1, 3, 1>} : memref<8x16x16xf32, #tpu.memory_space<vmem>>, vector<8x5x16xf32>
    %c0_4 = arith.constant 0 : index
    %c2 = arith.constant 2 : index
    %c0_5 = arith.constant 0 : index
    %2 = tpu.strided_load %arg2[%c0_4, %c2, %c0_5] {strides = array<i32: 1, 3, 1>} : memref<8x16x16xf32, #tpu.memory_space<vmem>>, vector<8x5x16xf32>
    %3 = arith.maximumf %0, %1 : vector<8x5x16xf32>
    %4 = arith.maximumf %3, %2 : vector<8x5x16xf32>
    %cst = arith.constant 0xFF800000 : f32
    %5 = vector.broadcast %cst : f32 to vector<8x5x2xf32>
    %6 = tpu.concatenate %4, %5 in 2 : vector<8x5x16xf32>, vector<8x5x2xf32> -> vector<8x5x18xf32>
    %7 = vector.shape_cast %6 : vector<8x5x18xf32> to vector<8x5x6x3xf32>
    %cst_6 = arith.constant dense<0xFF800000> : vector<8x5x6xf32>
    %8 = vector.multi_reduction <maximumf>, %7, %cst_6 [3] : vector<8x5x6x3xf32> to vector<8x5x6xf32>
    %c0_7 = arith.constant 0 : index
    %c15 = arith.constant 15 : index
    %c0_8 = arith.constant 0 : index
    %9 = vector.load %arg2[%c0_7, %c15, %c0_8] : memref<8x16x16xf32, #tpu.memory_space<vmem>>, vector<8x1x16xf32>
    %cst_9 = arith.constant dense<0xFF800000> : vector<8x16xf32>
    %10 = vector.multi_reduction <maximumf>, %9, %cst_9 [1] : vector<8x1x16xf32> to vector<8x16xf32>
    %11 = vector.shape_cast %10 : vector<8x16xf32> to vector<8x1x16xf32>
    %cst_10 = arith.constant 0xFF800000 : f32
    %12 = vector.broadcast %cst_10 : f32 to vector<8x1x2xf32>
    %13 = tpu.concatenate %11, %12 in 2 : vector<8x1x16xf32>, vector<8x1x2xf32> -> vector<8x1x18xf32>
    %14 = vector.shape_cast %13 : vector<8x1x18xf32> to vector<8x1x6x3xf32>
    %cst_11 = arith.constant dense<0xFF800000> : vector<8x1x6xf32>
    %15 = vector.multi_reduction <maximumf>, %14, %cst_11 [3] : vector<8x1x6x3xf32> to vector<8x1x6xf32>
    %16 = tpu.concatenate %8, %15 in 1 : vector<8x5x6xf32>, vector<8x1x6xf32> -> vector<8x6x6xf32>
    %c0_12 = arith.constant 0 : index
    %c0_13 = arith.constant 0 : index
    %c0_14 = arith.constant 0 : index
    %17 = vector.load %arg3[%c0_12, %c0_13, %c0_14] : memref<8x6x6xf32, #tpu.memory_space<vmem>>, vector<8x6x6xf32>
    tpu.vector_store %arg3[%c0_12, %c0_13, %c0_14], %16 {strides = array<i32>} : memref<8x6x6xf32, #tpu.memory_space<vmem>>, vector<8x6x6xf32>,
    return
  }
  func.func @transform_0(%arg0: i32, %arg1: i32) -> (i32, i32, i32) {
    %c0_i32 = arith.constant 0 : i32
    %c0_i32_0 = arith.constant 0 : i32
    return %arg0, %arg1, %c0_i32 : i32, i32, i32
  }
  func.func @transform_1(%arg0: i32, %arg1: i32) -> (i32, i32, i32) {
    %c0_i32 = arith.constant 0 : i32
    %c0_i32_0 = arith.constant 0 : i32
    return %arg0, %arg1, %c0_i32 : i32, i32, i32
  }
}

</mosaic_0001>

<llo_original>
// kernel: maxpool2d_k3_ceil.1
$region0: #{maxpool2d_k3_ceil.1}
  #allocation0 [shape = 'u32[]', space=smem, size = 0x4, offset = 0x4, fixed_abs, tag = 'smem constant byte address 0x4 - core index']
  #allocation1 [shape = 'u32[72,128]{1,0:T(1,128)}', space=vmem, size = 0x9000, scoped, tag = 'internal scratch']
  %s0 = inlined_call_operand.hbm [shape: f32[8,16,16], index: 0, kind: input, shape index: {}]
  %s1 = inlined_call_operand.vmem [shape: f32[8,6,6], index: 1, kind: output, shape index: {}]
  %s2 = sld [smem:[#allocation0]]
  $region18: #{maxpool2d_k3_ceil.1} parent=0
    _
  %s4 = ssub.s32 1, %s2
  %s5 = scalar_select 0, %s4, %s2
  $region1: #{maxpool2d_k3_ceil.1} parent=0
    #allocation2 [shape = 'u8[65536]{0}', space=vmem, size = 0x10000, scoped, tag = 'input window, operand 0, single buffered']
    #allocation3 [shape = 's32[1]{0}', space=sflag, size = 0x4, scoped, tag = 'scoped memory for maxpool2d_k3_ceil.1']
    %6 = vsyncpa [#allocation3], 0
    // Predicated region
    $region2: #{maxpool2d_k3_ceil.1} parent=1 // pred_check
      _
    $region3: #{maxpool2d_k3_ceil.1} parent=1 // pred_check_branch
      %8 = sbr.rel (0) target = $region5
    $region4: #{maxpool2d_k3_ceil.1} parent=1 // pred_region
      %10 = vsyncadd [#allocation3], 0
      %s11 = sshll.u32 %s0, 4
      %s12 = int_to_ptr.hbm [resolvable:$true] %s11
      %s13 = sshll.u32 [#allocation2], 4
      %s14 = int_to_ptr.vmem [resolvable:$true] %s13
      %19 = dma.hbm_to_vmem [thread:$0]  %s12, 2048, %s14, [#allocation3], 128, 128, 8
    $region5: #{maxpool2d_k3_ceil.1} parent=1 // pred_fallthru
      _
    // Predicated region
    $region6: #{maxpool2d_k3_ceil.1} parent=1 // pred_check
      _
    $region7: #{maxpool2d_k3_ceil.1} parent=1 // pred_check_branch
      %21 = sbr.rel (0) target = $region9
    $region8: #{maxpool2d_k3_ceil.1} parent=1 // pred_region
      %23 = dma.done [#allocation3], 2048
    $region9: #{maxpool2d_k3_ceil.1} parent=1 // pred_fallthru
      _
    %v24 = vld [vmem:[#allocation2] ss:$3 sm:$0x1f]
    %s25 = scalar_lea.vmem [#allocation2], 16
    %v26 = vld [vmem:[%s25] ss:$3 sm:$0x1f]
    %s27 = scalar_lea.vmem [#allocation2], 32
    %v28 = vld [vmem:[%s27] ss:$3 sm:$0x1f]
    %s29 = scalar_lea.vmem [#allocation2], 48
    %v30 = vld [vmem:[%s29] ss:$3 sm:$0x1f]
    %s31 = scalar_lea.vmem [#allocation2], 64
    %v32 = vld [vmem:[%s31] ss:$3 sm:$0x1f]
    %s33 = scalar_lea.vmem [#allocation2], 80
    %v34 = vld [vmem:[%s33] ss:$3 sm:$0x1f]
    %s35 = scalar_lea.vmem [#allocation2], 96
    %v36 = vld [vmem:[%s35] ss:$3 sm:$0x1f]
    %s37 = scalar_lea.vmem [#allocation2], 112
    %v38 = vld [vmem:[%s37] ss:$3 sm:$0x1f]
    %s39 = scalar_lea.vmem [#allocation2], 1
    %v40 = vld [vmem:[%s39] ss:$3 sm:$0x1f]
    %s41 = scalar_lea.vmem [#allocation2], 17
    %v42 = vld [vmem:[%s41] ss:$3 sm:$0x1f]
    %s43 = scalar_lea.vmem [#allocation2], 33
    %v44 = vld [vmem:[%s43] ss:$3 sm:$0x1f]
    %s45 = scalar_lea.vmem [#allocation2], 49
    %v46 = vld [vmem:[%s45] ss:$3 sm:$0x1f]
    %s47 = scalar_lea.vmem [#allocation2], 65
    %v48 = vld [vmem:[%s47] ss:$3 sm:$0x1f]
    %s49 = scalar_lea.vmem [#allocation2], 81
    %v50 = vld [vmem:[%s49] ss:$3 sm:$0x1f]
    %s51 = scalar_lea.vmem [#allocation2], 97
    %v52 = vld [vmem:[%s51] ss:$3 sm:$0x1f]
    %s53 = scalar_lea.vmem [#allocation2], 113
    %v54 = vld [vmem:[%s53] ss:$3 sm:$0x1f]
    %s55 = scalar_lea.vmem [#allocation2], 2
    %v56 = vld [vmem:[%s55] ss:$3 sm:$0x1f]
    %s57 = scalar_lea.vmem [#allocation2], 18
    %v58 = vld [vmem:[%s57] ss:$3 sm:$0x1f]
    %s59 = scalar_lea.vmem [#allocation2], 34
    %v60 = vld [vmem:[%s59] ss:$3 sm:$0x1f]
    %s61 = scalar_lea.vmem [#allocation2], 50
    %v62 = vld [vmem:[%s61] ss:$3 sm:$0x1f]
    %s63 = scalar_lea.vmem [#allocation2], 66
    %v64 = vld [vmem:[%s63] ss:$3 sm:$0x1f]
    %s65 = scalar_lea.vmem [#allocation2], 82
    %v66 = vld [vmem:[%s65] ss:$3 sm:$0x1f]
    %s67 = scalar_lea.vmem [#allocation2], 98
    %v68 = vld [vmem:[%s67] ss:$3 sm:$0x1f]
    %s69 = scalar_lea.vmem [#allocation2], 114
    %v70 = vld [vmem:[%s69] ss:$3 sm:$0x1f]
    %v71 = vmax.f32 %v24, %v40
    %v72 = vmax.f32 %v26, %v42
    %v73 = vmax.f32 %v28, %v44
    %v74 = vmax.f32 %v30, %v46
    %v75 = vmax.f32 %v32, %v48
    %v76 = vmax.f32 %v34, %v50
    %v77 = vmax.f32 %v36, %v52
    %v78 = vmax.f32 %v38, %v54
    %v79 = vmax.f32 %v71, %v56
    %v80 = vmax.f32 %v72, %v58
    %v81 = vmax.f32 %v73, %v60
    %v82 = vmax.f32 %v74, %v62
    %v83 = vmax.f32 %v75, %v64
    %v84 = vmax.f32 %v76, %v66
    %v85 = vmax.f32 %v77, %v68
    %v86 = vmax.f32 %v78, %v70
    %vm87 = vcmask 130048
    %v88 = vsel %vm87, %v79, -inf
    %v89 = vsel %vm87, %v80, -inf
    %v90 = vsel %vm87, %v81, -inf
    %v91 = vsel %vm87, %v82, -inf
    %v92 = vsel %vm87, %v83, -inf
    %v93 = vsel %vm87, %v84, -inf
    %v94 = vsel %vm87, %v85, -inf
    %v95 = vsel %vm87, %v86, -inf
    %104 = vrot.lane.b32.xlu0 %v88, 125
    %v105 = vpop.permute.xlu0 %104
    %106 = vrot.lane.b32.xlu0 %v89, 125
    %v107 = vpop.permute.xlu0 %106
    %108 = vrot.lane.b32.xlu0 %v90, 125
    %v109 = vpop.permute.xlu0 %108
    %110 = vrot.lane.b32.xlu0 %v91, 125
    %v111 = vpop.permute.xlu0 %110
    %112 = vrot.lane.b32.xlu0 %v92, 125
    %v113 = vpop.permute.xlu0 %112
    %114 = vrot.lane.b32.xlu0 %v93, 125
    %v115 = vpop.permute.xlu0 %114
    %116 = vrot.lane.b32.xlu0 %v94, 125
    %v117 = vpop.permute.xlu0 %116
    %118 = vrot.lane.b32.xlu0 %v95, 125
    %v119 = vpop.permute.xlu0 %118
    %128 = vrot.lane.b32.xlu0 %v88, 122
    %v129 = vpop.permute.xlu0 %128
    %130 = vrot.lane.b32.xlu0 %v89, 122
    %v131 = vpop.permute.xlu0 %130
    %132 = vrot.lane.b32.xlu0 %v90, 122
    %v133 = vpop.permute.xlu0 %132
    %134 = vrot.lane.b32.xlu0 %v91, 122
    %v135 = vpop.permute.xlu0 %134
    %136 = vrot.lane.b32.xlu0 %v92, 122
    %v137 = vpop.permute.xlu0 %136
    %138 = vrot.lane.b32.xlu0 %v93, 122
    %v139 = vpop.permute.xlu0 %138
    %140 = vrot.lane.b32.xlu0 %v94, 122
    %v141 = vpop.permute.xlu0 %140
    %142 = vrot.lane.b32.xlu0 %v95, 122
    %v143 = vpop.permute.xlu0 %142
    %152 = vrot.lane.b32.xlu0 %v88, 119
    %v153 = vpop.permute.xlu0 %152
    %154 = vrot.lane.b32.xlu0 %v89, 119
    %v155 = vpop.permute.xlu0 %154
    %156 = vrot.lane.b32.xlu0 %v90, 119
    %v157 = vpop.permute.xlu0 %156
    %158 = vrot.lane.b32.xlu0 %v91, 119
    %v159 = vpop.permute.xlu0 %158
    %160 = vrot.lane.b32.xlu0 %v92, 119
    %v161 = vpop.permute.xlu0 %160
    %162 = vrot.lane.b32.xlu0 %v93, 119
    %v163 = vpop.permute.xlu0 %162
    %164 = vrot.lane.b32.xlu0 %v94, 119
    %v165 = vpop.permute.xlu0 %164
    %166 = vrot.lane.b32.xlu0 %v95, 119
    %v167 = vpop.permute.xlu0 %166
    %176 = vrot.lane.b32.xlu0 %v88, 116
    %v177 = vpop.permute.xlu0 %176
    %178 = vrot.lane.b32.xlu0 %v89, 116
    %v179 = vpop.permute.xlu0 %178
    %180 = vrot.lane.b32.xlu0 %v90, 116
    %v181 = vpop.permute.xlu0 %180
    %182 = vrot.lane.b32.xlu0 %v91, 116
    %v183 = vpop.permute.xlu0 %182
    %184 = vrot.lane.b32.xlu0 %v92, 116
    %v185 = vpop.permute.xlu0 %184
    %186 = vrot.lane.b32.xlu0 %v93, 116
    %v187 = vpop.permute.xlu0 %186
    %188 = vrot.lane.b32.xlu0 %v94, 116
    %v189 = vpop.permute.xlu0 %188
    %190 = vrot.lane.b32.xlu0 %v95, 116
    %v191 = vpop.permute.xlu0 %190
    %200 = vrot.lane.b32.xlu0 %v88, 113
    %v201 = vpop.permute.xlu0 %200
    %202 = vrot.lane.b32.xlu0 %v89, 113
    %v203 = vpop.permute.xlu0 %202
    %204 = vrot.lane.b32.xlu0 %v90, 113
    %v205 = vpop.permute.xlu0 %204
    %206 = vrot.lane.b32.xlu0 %v91, 113
    %v207 = vpop.permute.xlu0 %206
    %208 = vrot.lane.b32.xlu0 %v92, 113
    %v209 = vpop.permute.xlu0 %208
    %210 = vrot.lane.b32.xlu0 %v93, 113
    %v211 = vpop.permute.xlu0 %210
    %212 = vrot.lane.b32.xlu0 %v94, 113
    %v213 = vpop.permute.xlu0 %212
    %214 = vrot.lane.b32.xlu0 %v95, 113
    %v215 = vpop.permute.xlu0 %214
    %v224 = vrot.slane %v129, 4
    %vm225 = vcmask 1047556
    %v226 = vsel %vm225, %v224, %v88
    %v227 = vrot.slane %v88, 4
    %v228 = vsel %vm225, %v129, %v227
    %v230 = vunpack.c.l.s4 1983009808
    %v231 = vunpack.c.0.s8 %v230
    %v232 = vperm.slane %v226, %v231
    %v234 = vunpack.c.l.s4 1983009808
    %v235 = vunpack.c.0.s8 %v234
    %v236 = vperm.slane %v228, %v235
    %v237 = vrot.slane %v153, 4
    %v238 = vsel %vm225, %v237, %v105
    %v239 = vrot.slane %v105, 4
    %v240 = vsel %vm225, %v153, %v239
    %v242 = vunpack.c.l.s4 1983009808
    %v243 = vunpack.c.0.s8 %v242
    %v244 = vperm.slane %v238, %v243
    %v246 = vunpack.c.l.s4 1983009808
    %v247 = vunpack.c.0.s8 %v246
    %v248 = vperm.slane %v240, %v247
    %v250 = vunpack.c.l.s4 1983009808
    %v251 = vunpack.c.0.s8 %v250
    %v252 = vperm.slane %v177, %v251
    %v253 = vrot.slane %v177, 4
    %v254 = vsel %vm225, 0.0, %v253
    %v256 = vunpack.c.l.s4 1983009808
    %v257 = vunpack.c.0.s8 %v256
    %v258 = vperm.slane %v201, %v257
    %v259 = vrot.slane %v201, 4
    %v260 = vsel %vm225, 0.0, %v259
    %v261 = vrot.slane %v244, 4
    %v262 = vsel %vm225, %v261, %v232
    %v263 = vrot.slane %v232, 4
    %v264 = vsel %vm225, %v244, %v263
    %v266 = vunpack.c.l.s4 1934713408
    %v267 = vunpack.c.0.s8 %v266
    %v268 = vperm.slane %v262, %v267
    %v270 = vunpack.c.l.s4 1934713408
    %v271 = vunpack.c.0.s8 %v270
    %v272 = vperm.slane %v264, %v271
    %v273 = vrot.slane %v248, 4
    %v274 = vsel %vm225, %v273, %v236
    %v276 = vunpack.c.l.s4 1934713408
    %v277 = vunpack.c.0.s8 %v276
    %v278 = vperm.slane %v274, %v277
    %v279 = vrot.slane %v258, 4
    %v280 = vsel %vm225, %v279, %v252
    %v281 = vrot.slane %v252, 4
    %v282 = vsel %vm225, %v258, %v281
    %v284 = vunpack.c.l.s4 1934713408
    %v285 = vunpack.c.0.s8 %v284
    %v286 = vperm.slane %v280, %v285
    %v288 = vunpack.c.l.s4 1934713408
    %v289 = vunpack.c.0.s8 %v288
    %v290 = vperm.slane %v282, %v289
    %v291 = vrot.slane %v260, 4
    %v292 = vsel %vm225, %v291, %v254
    %v294 = vunpack.c.l.s4 1934713408
    %v295 = vunpack.c.0.s8 %v294
    %v296 = vperm.slane %v292, %v295
    %v297 = vrot.slane %v286, 4
    %v298 = vsel %vm225, %v297, %v268
    %v299 = vrot.slane %v268, 4
    %v300 = vsel %vm225, %v286, %v299
    %v301 = vrot.slane %v290, 4
    %v302 = vsel %vm225, %v301, %v272
    %v303 = vrot.slane %v272, 4
    %v304 = vsel %vm225, %v290, %v303
    %v305 = vrot.slane %v296, 4
    %v306 = vsel %vm225, %v305, %v278
    %v307 = vrot.slane %v131, 4
    %v308 = vsel %vm225, %v307, %v89
    %v309 = vrot.slane %v89, 4
    %v310 = vsel %vm225, %v131, %v309
    %v312 = vunpack.c.l.s4 1983009808
    %v313 = vunpack.c.0.s8 %v312
    %v314 = vperm.slane %v308, %v313
    %v316 = vunpack.c.l.s4 1983009808
    %v317 = vunpack.c.0.s8 %v316
    %v318 = vperm.slane %v310, %v317
    %v319 = vrot.slane %v155, 4
    %v320 = vsel %vm225, %v319, %v107
    %v321 = vrot.slane %v107, 4
    %v322 = vsel %vm225, %v155, %v321
    %v324 = vunpack.c.l.s4 1983009808
    %v325 = vunpack.c.0.s8 %v324
    %v326 = vperm.slane %v320, %v325
    %v328 = vunpack.c.l.s4 1983009808
    %v329 = vunpack.c.0.s8 %v328
    %v330 = vperm.slane %v322, %v329
    %v332 = vunpack.c.l.s4 1983009808
    %v333 = vunpack.c.0.s8 %v332
    %v334 = vperm.slane %v179, %v333
    %v335 = vrot.slane %v179, 4
    %v336 = vsel %vm225, 0.0, %v335
    %v338 = vunpack.c.l.s4 1983009808
    %v339 = vunpack.c.0.s8 %v338
    %v340 = vperm.slane %v203, %v339
    %v341 = vrot.slane %v203, 4
    %v342 = vsel %vm225, 0.0, %v341
    %v343 = vrot.slane %v326, 4
    %v344 = vsel %vm225, %v343, %v314
    %v345 = vrot.slane %v314, 4
    %v346 = vsel %vm225, %v326, %v345
    %v348 = vunpack.c.l.s4 1934713408
    %v349 = vunpack.c.0.s8 %v348
    %v350 = vperm.slane %v344, %v349
    %v352 = vunpack.c.l.s4 1934713408
    %v353 = vunpack.c.0.s8 %v352
    %v354 = vperm.slane %v346, %v353
    %v355 = vrot.slane %v330, 4
    %v356 = vsel %vm225, %v355, %v318
    %v358 = vunpack.c.l.s4 1934713408
    %v359 = vunpack.c.0.s8 %v358
    %v360 = vperm.slane %v356, %v359
    %v361 = vrot.slane %v340, 4
    %v362 = vsel %vm225, %v361, %v334
    %v363 = vrot.slane %v334, 4
    %v364 = vsel %vm225, %v340, %v363
    %v366 = vunpack.c.l.s4 1934713408
    %v367 = vunpack.c.0.s8 %v366
    %v368 = vperm.slane %v362, %v367
    %v370 = vunpack.c.l.s4 1934713408
    %v371 = vunpack.c.0.s8 %v370
    %v372 = vperm.slane %v364, %v371
    %v373 = vrot.slane %v342, 4
    %v374 = vsel %vm225, %v373, %v336
    %v376 = vunpack.c.l.s4 1934713408
    %v377 = vunpack.c.0.s8 %v376
    %v378 = vperm.slane %v374, %v377
    %v379 = vrot.slane %v368, 4
    %v380 = vsel %vm225, %v379, %v350
    %v381 = vrot.slane %v350, 4
    %v382 = vsel %vm225, %v368, %v381
    %v383 = vrot.slane %v372, 4
    %v384 = vsel %vm225, %v383, %v354
    %v385 = vrot.slane %v354, 4
    %v386 = vsel %vm225, %v372, %v385
    %v387 = vrot.slane %v378, 4
    %v388 = vsel %vm225, %v387, %v360
    %v389 = vrot.slane %v133, 4
    %v390 = vsel %vm225, %v389, %v90
    %v391 = vrot.slane %v90, 4
    %v392 = vsel %vm225, %v133, %v391
    %v394 = vunpack.c.l.s4 1983009808
    %v395 = vunpack.c.0.s8 %v394
    %v396 = vperm.slane %v390, %v395
    %v398 = vunpack.c.l.s4 1983009808
    %v399 = vunpack.c.0.s8 %v398
    %v400 = vperm.slane %v392, %v399
    %v401 = vrot.slane %v157, 4
    %v402 = vsel %vm225, %v401, %v109
    %v403 = vrot.slane %v109, 4
    %v404 = vsel %vm225, %v157, %v403
    %v406 = vunpack.c.l.s4 1983009808
    %v407 = vunpack.c.0.s8 %v406
    %v408 = vperm.slane %v402, %v407
    %v410 = vunpack.c.l.s4 1983009808
    %v411 = vunpack.c.0.s8 %v410
    %v412 = vperm.slane %v404, %v411
    %v414 = vunpack.c.l.s4 1983009808
    %v415 = vunpack.c.0.s8 %v414
    %v416 = vperm.slane %v181, %v415
    %v417 = vrot.slane %v181, 4
    %v418 = vsel %vm225, 0.0, %v417
    %v420 = vunpack.c.l.s4 1983009808
    %v421 = vunpack.c.0.s8 %v420
    %v422 = vperm.slane %v205, %v421
    %v423 = vrot.slane %v205, 4
    %v424 = vsel %vm225, 0.0, %v423
    %v425 = vrot.slane %v408, 4
    %v426 = vsel %vm225, %v425, %v396
    %v427 = vrot.slane %v396, 4
    %v428 = vsel %vm225, %v408, %v427
    %v430 = vunpack.c.l.s4 1934713408
    %v431 = vunpack.c.0.s8 %v430
    %v432 = vperm.slane %v426, %v431
    %v434 = vunpack.c.l.s4 1934713408
    %v435 = vunpack.c.0.s8 %v434
    %v436 = vperm.slane %v428, %v435
    %v437 = vrot.slane %v412, 4
    %v438 = vsel %vm225, %v437, %v400
    %v440 = vunpack.c.l.s4 1934713408
    %v441 = vunpack.c.0.s8 %v440
    %v442 = vperm.slane %v438, %v441
    %v443 = vrot.slane %v422, 4
    %v444 = vsel %vm225, %v443, %v416
    %v445 = vrot.slane %v416, 4
    %v446 = vsel %vm225, %v422, %v445
    %v448 = vunpack.c.l.s4 1934713408
    %v449 = vunpack.c.0.s8 %v448
    %v450 = vperm.slane %v444, %v449
    %v452 = vunpack.c.l.s4 1934713408
    %v453 = vunpack.c.0.s8 %v452
    %v454 = vperm.slane %v446, %v453
    %v455 = vrot.slane %v424, 4
    %v456 = vsel %vm225, %v455, %v418
    %v458 = vunpack.c.l.s4 1934713408
    %v459 = vunpack.c.0.s8 %v458
    %v460 = vperm.slane %v456, %v459
    %v461 = vrot.slane %v450, 4
    %v462 = vsel %vm225, %v461, %v432
    %v463 = vrot.slane %v432, 4
    %v464 = vsel %vm225, %v450, %v463
    %v465 = vrot.slane %v454, 4
    %v466 = vsel %vm225, %v465, %v436
    %v467 = vrot.slane %v436, 4
    %v468 = vsel %vm225, %v454, %v467
    %v469 = vrot.slane %v460, 4
    %v470 = vsel %vm225, %v469, %v442
    %v471 = vrot.slane %v135, 4
    %v472 = vsel %vm225, %v471, %v91
    %v473 = vrot.slane %v91, 4
    %v474 = vsel %vm225, %v135, %v473
    %v476 = vunpack.c.l.s4 1983009808
    %v477 = vunpack.c.0.s8 %v476
    %v478 = vperm.slane %v472, %v477
    %v480 = vunpack.c.l.s4 1983009808
    %v481 = vunpack.c.0.s8 %v480
    %v482 = vperm.slane %v474, %v481
    %v483 = vrot.slane %v159, 4
    %v484 = vsel %vm225, %v483, %v111
    %v485 = vrot.slane %v111, 4
    %v486 = vsel %vm225, %v159, %v485
    %v488 = vunpack.c.l.s4 1983009808
    %v489 = vunpack.c.0.s8 %v488
    %v490 = vperm.slane %v484, %v489
    %v492 = vunpack.c.l.s4 1983009808
    %v493 = vunpack.c.0.s8 %v492
    %v494 = vperm.slane %v486, %v493
    %v496 = vunpack.c.l.s4 1983009808
    %v497 = vunpack.c.0.s8 %v496
    %v498 = vperm.slane %v183, %v497
    %v499 = vrot.slane %v183, 4
    %v500 = vsel %vm225, 0.0, %v499
    %v502 = vunpack.c.l.s4 1983009808
    %v503 = vunpack.c.0.s8 %v502
    %v504 = vperm.slane %v207, %v503
    %v505 = vrot.slane %v207, 4
    %v506 = vsel %vm225, 0.0, %v505
    %v507 = vrot.slane %v490, 4
    %v508 = vsel %vm225, %v507, %v478
    %v509 = vrot.slane %v478, 4
    %v510 = vsel %vm225, %v490, %v509
    %v512 = vunpack.c.l.s4 1934713408
    %v513 = vunpack.c.0.s8 %v512
    %v514 = vperm.slane %v508, %v513
    %v516 = vunpack.c.l.s4 1934713408
    %v517 = vunpack.c.0.s8 %v516
    %v518 = vperm.slane %v510, %v517
    %v519 = vrot.slane %v494, 4
    %v520 = vsel %vm225, %v519, %v482
    %v522 = vunpack.c.l.s4 1934713408
    %v523 = vunpack.c.0.s8 %v522
    %v524 = vperm.slane %v520, %v523
    %v525 = vrot.slane %v504, 4
    %v526 = vsel %vm225, %v525, %v498
    %v527 = vrot.slane %v498, 4
    %v528 = vsel %vm225, %v504, %v527
    %v530 = vunpack.c.l.s4 1934713408
    %v531 = vunpack.c.0.s8 %v530
    %v532 = vperm.slane %v526, %v531
    %v534 = vunpack.c.l.s4 1934713408
    %v535 = vunpack.c.0.s8 %v534
    %v536 = vperm.slane %v528, %v535
    %v537 = vrot.slane %v506, 4
    %v538 = vsel %vm225, %v537, %v500
    %v540 = vunpack.c.l.s4 1934713408
    %v541 = vunpack.c.0.s8 %v540
    %v542 = vperm.slane %v538, %v541
    %v543 = vrot.slane %v532, 4
    %v544 = vsel %vm225, %v543, %v514
    %v545 = vrot.slane %v514, 4
    %v546 = vsel %vm225, %v532, %v545
    %v547 = vrot.slane %v536, 4
    %v548 = vsel %vm225, %v547, %v518
    %v549 = vrot.slane %v518, 4
    %v550 = vsel %vm225, %v536, %v549
    %v551 = vrot.slane %v542, 4
    %v552 = vsel %vm225, %v551, %v524
    %v553 = vrot.slane %v137, 4
    %v554 = vsel %vm225, %v553, %v92
    %v555 = vrot.slane %v92, 4
    %v556 = vsel %vm225, %v137, %v555
    %v558 = vunpack.c.l.s4 1983009808
    %v559 = vunpack.c.0.s8 %v558
    %v560 = vperm.slane %v554, %v559
    %v562 = vunpack.c.l.s4 1983009808
    %v563 = vunpack.c.0.s8 %v562
    %v564 = vperm.slane %v556, %v563
    %v565 = vrot.slane %v161, 4
    %v566 = vsel %vm225, %v565, %v113
    %v567 = vrot.slane %v113, 4
    %v568 = vsel %vm225, %v161, %v567
    %v570 = vunpack.c.l.s4 1983009808
    %v571 = vunpack.c.0.s8 %v570
    %v572 = vperm.slane %v566, %v571
    %v574 = vunpack.c.l.s4 1983009808
    %v575 = vunpack.c.0.s8 %v574
    %v576 = vperm.slane %v568, %v575
    %v578 = vunpack.c.l.s4 1983009808
    %v579 = vunpack.c.0.s8 %v578
    %v580 = vperm.slane %v185, %v579
    %v581 = vrot.slane %v185, 4
    %v582 = vsel %vm225, 0.0, %v581
    %v584 = vunpack.c.l.s4 1983009808
    %v585 = vunpack.c.0.s8 %v584
    %v586 = vperm.slane %v209, %v585
    %v587 = vrot.slane %v209, 4
    %v588 = vsel %vm225, 0.0, %v587
    %v589 = vrot.slane %v572, 4
    %v590 = vsel %vm225, %v589, %v560
    %v591 = vrot.slane %v560, 4
    %v592 = vsel %vm225, %v572, %v591
    %v594 = vunpack.c.l.s4 1934713408
    %v595 = vunpack.c.0.s8 %v594
    %v596 = vperm.slane %v590, %v595
    %v598 = vunpack.c.l.s4 1934713408
    %v599 = vunpack.c.0.s8 %v598
    %v600 = vperm.slane %v592, %v599
    %v601 = vrot.slane %v576, 4
    %v602 = vsel %vm225, %v601, %v564
    %v604 = vunpack.c.l.s4 1934713408
    %v605 = vunpack.c.0.s8 %v604
    %v606 = vperm.slane %v602, %v605
    %v607 = vrot.slane %v586, 4
    %v608 = vsel %vm225, %v607, %v580
    %v609 = vrot.slane %v580, 4
    %v610 = vsel %vm225, %v586, %v609
    %v612 = vunpack.c.l.s4 1934713408
    %v613 = vunpack.c.0.s8 %v612
    %v614 = vperm.slane %v608, %v613
    %v616 = vunpack.c.l.s4 1934713408
    %v617 = vunpack.c.0.s8 %v616
    %v618 = vperm.slane %v610, %v617
    %v619 = vrot.slane %v588, 4
    %v620 = vsel %vm225, %v619, %v582
    %v622 = vunpack.c.l.s4 1934713408
    %v623 = vunpack.c.0.s8 %v622
    %v624 = vperm.slane %v620, %v623
    %v625 = vrot.slane %v614, 4
    %v626 = vsel %vm225, %v625, %v596
    %v627 = vrot.slane %v596, 4
    %v628 = vsel %vm225, %v614, %v627
    %v629 = vrot.slane %v618, 4
    %v630 = vsel %vm225, %v629, %v600
    %v631 = vrot.slane %v600, 4
    %v632 = vsel %vm225, %v618, %v631
    %v633 = vrot.slane %v624, 4
    %v634 = vsel %vm225, %v633, %v606
    %v635 = vrot.slane %v139, 4
    %v636 = vsel %vm225, %v635, %v93
    %v637 = vrot.slane %v93, 4
    %v638 = vsel %vm225, %v139, %v637
    %v640 = vunpack.c.l.s4 1983009808
    %v641 = vunpack.c.0.s8 %v640
    %v642 = vperm.slane %v636, %v641
    %v644 = vunpack.c.l.s4 1983009808
    %v645 = vunpack.c.0.s8 %v644
    %v646 = vperm.slane %v638, %v645
    %v647 = vrot.slane %v163, 4
    %v648 = vsel %vm225, %v647, %v115
    %v649 = vrot.slane %v115, 4
    %v650 = vsel %vm225, %v163, %v649
    %v652 = vunpack.c.l.s4 1983009808
    %v653 = vunpack.c.0.s8 %v652
    %v654 = vperm.slane %v648, %v653
    %v656 = vunpack.c.l.s4 1983009808
    %v657 = vunpack.c.0.s8 %v656
    %v658 = vperm.slane %v650, %v657
    %v660 = vunpack.c.l.s4 1983009808
    %v661 = vunpack.c.0.s8 %v660
    %v662 = vperm.slane %v187, %v661
    %v663 = vrot.slane %v187, 4
    %v664 = vsel %vm225, 0.0, %v663
    %v666 = vunpack.c.l.s4 1983009808
    %v667 = vunpack.c.0.s8 %v666
    %v668 = vperm.slane %v211, %v667
    %v669 = vrot.slane %v211, 4
    %v670 = vsel %vm225, 0.0, %v669
    %v671 = vrot.slane %v654, 4
    %v672 = vsel %vm225, %v671, %v642
    %v673 = vrot.slane %v642, 4
    %v674 = vsel %vm225, %v654, %v673
    %v676 = vunpack.c.l.s4 1934713408
    %v677 = vunpack.c.0.s8 %v676
    %v678 = vperm.slane %v672, %v677
    %v680 = vunpack.c.l.s4 1934713408
    %v681 = vunpack.c.0.s8 %v680
    %v682 = vperm.slane %v674, %v681
    %v683 = vrot.slane %v658, 4
    %v684 = vsel %vm225, %v683, %v646
    %v686 = vunpack.c.l.s4 1934713408
    %v687 = vunpack.c.0.s8 %v686
    %v688 = vperm.slane %v684, %v687
    %v689 = vrot.slane %v668, 4
    %v690 = vsel %vm225, %v689, %v662
    %v691 = vrot.slane %v662, 4
    %v692 = vsel %vm225, %v668, %v691
    %v694 = vunpack.c.l.s4 1934713408
    %v695 = vunpack.c.0.s8 %v694
    %v696 = vperm.slane %v690, %v695
    %v698 = vunpack.c.l.s4 1934713408
    %v699 = vunpack.c.0.s8 %v698
    %v700 = vperm.slane %v692, %v699
    %v701 = vrot.slane %v670, 4
    %v702 = vsel %vm225, %v701, %v664
    %v704 = vunpack.c.l.s4 1934713408
    %v705 = vunpack.c.0.s8 %v704
    %v706 = vperm.slane %v702, %v705
    %v707 = vrot.slane %v696, 4
    %v708 = vsel %vm225, %v707, %v678
    %v709 = vrot.slane %v678, 4
    %v710 = vsel %vm225, %v696, %v709
    %v711 = vrot.slane %v700, 4
    %v712 = vsel %vm225, %v711, %v682
    %v713 = vrot.slane %v682, 4
    %v714 = vsel %vm225, %v700, %v713
    %v715 = vrot.slane %v706, 4
    %v716 = vsel %vm225, %v715, %v688
    %v717 = vrot.slane %v141, 4
    %v718 = vsel %vm225, %v717, %v94
    %v719 = vrot.slane %v94, 4
    %v720 = vsel %vm225, %v141, %v719
    %v722 = vunpack.c.l.s4 1983009808
    %v723 = vunpack.c.0.s8 %v722
    %v724 = vperm.slane %v718, %v723
    %v726 = vunpack.c.l.s4 1983009808
    %v727 = vunpack.c.0.s8 %v726
    %v728 = vperm.slane %v720, %v727
    %v729 = vrot.slane %v165, 4
    %v730 = vsel %vm225, %v729, %v117
    %v731 = vrot.slane %v117, 4
    %v732 = vsel %vm225, %v165, %v731
    %v734 = vunpack.c.l.s4 1983009808
    %v735 = vunpack.c.0.s8 %v734
    %v736 = vperm.slane %v730, %v735
    %v738 = vunpack.c.l.s4 1983009808
    %v739 = vunpack.c.0.s8 %v738
    %v740 = vperm.slane %v732, %v739
    %v742 = vunpack.c.l.s4 1983009808
    %v743 = vunpack.c.0.s8 %v742
    %v744 = vperm.slane %v189, %v743
    %v745 = vrot.slane %v189, 4
    %v746 = vsel %vm225, 0.0, %v745
    %v748 = vunpack.c.l.s4 1983009808
    %v749 = vunpack.c.0.s8 %v748
    %v750 = vperm.slane %v213, %v749
    %v751 = vrot.slane %v213, 4
    %v752 = vsel %vm225, 0.0, %v751
    %v753 = vrot.slane %v736, 4
    %v754 = vsel %vm225, %v753, %v724
    %v755 = vrot.slane %v724, 4
    %v756 = vsel %vm225, %v736, %v755
    %v758 = vunpack.c.l.s4 1934713408
    %v759 = vunpack.c.0.s8 %v758
    %v760 = vperm.slane %v754, %v759
    %v762 = vunpack.c.l.s4 1934713408
    %v763 = vunpack.c.0.s8 %v762
    %v764 = vperm.slane %v756, %v763
    %v765 = vrot.slane %v740, 4
    %v766 = vsel %vm225, %v765, %v728
    %v768 = vunpack.c.l.s4 1934713408
    %v769 = vunpack.c.0.s8 %v768
    %v770 = vperm.slane %v766, %v769
    %v771 = vrot.slane %v750, 4
    %v772 = vsel %vm225, %v771, %v744
    %v773 = vrot.slane %v744, 4
    %v774 = vsel %vm225, %v750, %v773
    %v776 = vunpack.c.l.s4 1934713408
    %v777 = vunpack.c.0.s8 %v776
    %v778 = vperm.slane %v772, %v777
    %v780 = vunpack.c.l.s4 1934713408
    %v781 = vunpack.c.0.s8 %v780
    %v782 = vperm.slane %v774, %v781
    %v783 = vrot.slane %v752, 4
    %v784 = vsel %vm225, %v783, %v746
    %v786 = vunpack.c.l.s4 1934713408
    %v787 = vunpack.c.0.s8 %v786
    %v788 = vperm.slane %v784, %v787
    %v789 = vrot.slane %v778, 4
    %v790 = vsel %vm225, %v789, %v760
    %v791 = vrot.slane %v760, 4
    %v792 = vsel %vm225, %v778, %v791
    %v793 = vrot.slane %v782, 4
    %v794 = vsel %vm225, %v793, %v764
    %v795 = vrot.slane %v764, 4
    %v796 = vsel %vm225, %v782, %v795
    %v797 = vrot.slane %v788, 4
    %v798 = vsel %vm225, %v797, %v770
    %v799 = vrot.slane %v143, 4
    %v800 = vsel %vm225, %v799, %v95
    %v801 = vrot.slane %v95, 4
    %v802 = vsel %vm225, %v143, %v801
    %v804 = vunpack.c.l.s4 1983009808
    %v805 = vunpack.c.0.s8 %v804
    %v806 = vperm.slane %v800, %v805
    %v808 = vunpack.c.l.s4 1983009808
    %v809 = vunpack.c.0.s8 %v808
    %v810 = vperm.slane %v802, %v809
    %v811 = vrot.slane %v167, 4
    %v812 = vsel %vm225, %v811, %v119
    %v813 = vrot.slane %v119, 4
    %v814 = vsel %vm225, %v167, %v813
    %v816 = vunpack.c.l.s4 1983009808
    %v817 = vunpack.c.0.s8 %v816
    %v818 = vperm.slane %v812, %v817
    %v820 = vunpack.c.l.s4 1983009808
    %v821 = vunpack.c.0.s8 %v820
    %v822 = vperm.slane %v814, %v821
    %v824 = vunpack.c.l.s4 1983009808
    %v825 = vunpack.c.0.s8 %v824
    %v826 = vperm.slane %v191, %v825
    %v827 = vrot.slane %v191, 4
    %v828 = vsel %vm225, 0.0, %v827
    %v830 = vunpack.c.l.s4 1983009808
    %v831 = vunpack.c.0.s8 %v830
    %v832 = vperm.slane %v215, %v831
    %v833 = vrot.slane %v215, 4
    %v834 = vsel %vm225, 0.0, %v833
    %v835 = vrot.slane %v818, 4
    %v836 = vsel %vm225, %v835, %v806
    %v837 = vrot.slane %v806, 4
    %v838 = vsel %vm225, %v818, %v837
    %v840 = vunpack.c.l.s4 1934713408
    %v841 = vunpack.c.0.s8 %v840
    %v842 = vperm.slane %v836, %v841
    %v844 = vunpack.c.l.s4 1934713408
    %v845 = vunpack.c.0.s8 %v844
    %v846 = vperm.slane %v838, %v845
    %v847 = vrot.slane %v822, 4
    %v848 = vsel %vm225, %v847, %v810
    %v850 = vunpack.c.l.s4 1934713408
    %v851 = vunpack.c.0.s8 %v850
    %v852 = vperm.slane %v848, %v851
    %v853 = vrot.slane %v832, 4
    %v854 = vsel %vm225, %v853, %v826
    %v855 = vrot.slane %v826, 4
    %v856 = vsel %vm225, %v832, %v855
    %v858 = vunpack.c.l.s4 1934713408
    %v859 = vunpack.c.0.s8 %v858
    %v860 = vperm.slane %v854, %v859
    %v862 = vunpack.c.l.s4 1934713408
    %v863 = vunpack.c.0.s8 %v862
    %v864 = vperm.slane %v856, %v863
    %v865 = vrot.slane %v834, 4
    %v866 = vsel %vm225, %v865, %v828
    %v868 = vunpack.c.l.s4 1934713408
    %v869 = vunpack.c.0.s8 %v868
    %v870 = vperm.slane %v866, %v869
    %v871 = vrot.slane %v860, 4
    %v872 = vsel %vm225, %v871, %v842
    %v873 = vrot.slane %v842, 4
    %v874 = vsel %vm225, %v860, %v873
    %v875 = vrot.slane %v864, 4
    %v876 = vsel %vm225, %v875, %v846
    %v877 = vrot.slane %v846, 4
    %v878 = vsel %vm225, %v864, %v877
    %v879 = vrot.slane %v870, 4
    %v880 = vsel %vm225, %v879, %v852
    %vm881 = vcmask 21504
    %v882 = vsel %vm881, %v298, -inf
    %883 = vmax.xlane.f32.xlu0 %v882
    %v884 = vpop.xlane.xlu0 %883
    %v885 = vsel %vm881, %v300, -inf
    %886 = vmax.xlane.f32.xlu0 %v885
    %v887 = vpop.xlane.xlu0 %886
    %v888 = vsel %vm881, %v302, -inf
    %889 = vmax.xlane.f32.xlu0 %v888
    %v890 = vpop.xlane.xlu0 %889
    %v891 = vsel %vm881, %v304, -inf
    %892 = vmax.xlane.f32.xlu0 %v891
    %v893 = vpop.xlane.xlu0 %892
    %v894 = vsel %vm881, %v306, -inf
    %895 = vmax.xlane.f32.xlu0 %v894
    %v896 = vpop.xlane.xlu0 %895
    %v897 = vsel %vm881, %v380, -inf
    %898 = vmax.xlane.f32.xlu0 %v897
    %v899 = vpop.xlane.xlu0 %898
    %v900 = vsel %vm881, %v382, -inf
    %901 = vmax.xlane.f32.xlu0 %v900
    %v902 = vpop.xlane.xlu0 %901
    %v903 = vsel %vm881, %v384, -inf
    %904 = vmax.xlane.f32.xlu0 %v903
    %v905 = vpop.xlane.xlu0 %904
    %v906 = vsel %vm881, %v386, -inf
    %907 = vmax.xlane.f32.xlu0 %v906
    %v908 = vpop.xlane.xlu0 %907
    %v909 = vsel %vm881, %v388, -inf
    %910 = vmax.xlane.f32.xlu0 %v909
    %v911 = vpop.xlane.xlu0 %910
    %v912 = vsel %vm881, %v462, -inf
    %913 = vmax.xlane.f32.xlu0 %v912
    %v914 = vpop.xlane.xlu0 %913
    %v915 = vsel %vm881, %v464, -inf
    %916 = vmax.xlane.f32.xlu0 %v915
    %v917 = vpop.xlane.xlu0 %916
    %v918 = vsel %vm881, %v466, -inf
    %919 = vmax.xlane.f32.xlu0 %v918
    %v920 = vpop.xlane.xlu0 %919
    %v921 = vsel %vm881, %v468, -inf
    %922 = vmax.xlane.f32.xlu0 %v921
    %v923 = vpop.xlane.xlu0 %922
    %v924 = vsel %vm881, %v470, -inf
    %925 = vmax.xlane.f32.xlu0 %v924
    %v926 = vpop.xlane.xlu0 %925
    %v927 = vsel %vm881, %v544, -inf
    %928 = vmax.xlane.f32.xlu0 %v927
    %v929 = vpop.xlane.xlu0 %928
    %v930 = vsel %vm881, %v546, -inf
    %931 = vmax.xlane.f32.xlu0 %v930
    %v932 = vpop.xlane.xlu0 %931
    %v933 = vsel %vm881, %v548, -inf
    %934 = vmax.xlane.f32.xlu0 %v933
    %v935 = vpop.xlane.xlu0 %934
    %v936 = vsel %vm881, %v550, -inf
    %937 = vmax.xlane.f32.xlu0 %v936
    %v938 = vpop.xlane.xlu0 %937
    %v939 = vsel %vm881, %v552, -inf
    %940 = vmax.xlane.f32.xlu0 %v939
    %v941 = vpop.xlane.xlu0 %940
    %v942 = vsel %vm881, %v626, -inf
    %943 = vmax.xlane.f32.xlu0 %v942
    %v944 = vpop.xlane.xlu0 %943
    %v945 = vsel %vm881, %v628, -inf
    %946 = vmax.xlane.f32.xlu0 %v945
    %v947 = vpop.xlane.xlu0 %946
    %v948 = vsel %vm881, %v630, -inf
    %949 = vmax.xlane.f32.xlu0 %v948
    %v950 = vpop.xlane.xlu0 %949
    %v951 = vsel %vm881, %v632, -inf
    %952 = vmax.xlane.f32.xlu0 %v951
    %v953 = vpop.xlane.xlu0 %952
    %v954 = vsel %vm881, %v634, -inf
    %955 = vmax.xlane.f32.xlu0 %v954
    %v956 = vpop.xlane.xlu0 %955
    %v957 = vsel %vm881, %v708, -inf
    %958 = vmax.xlane.f32.xlu0 %v957
    %v959 = vpop.xlane.xlu0 %958
    %v960 = vsel %vm881, %v710, -inf
    %961 = vmax.xlane.f32.xlu0 %v960
    %v962 = vpop.xlane.xlu0 %961
    %v963 = vsel %vm881, %v712, -inf
    %964 = vmax.xlane.f32.xlu0 %v963
    %v965 = vpop.xlane.xlu0 %964
    %v966 = vsel %vm881, %v714, -inf
    %967 = vmax.xlane.f32.xlu0 %v966
    %v968 = vpop.xlane.xlu0 %967
    %v969 = vsel %vm881, %v716, -inf
    %970 = vmax.xlane.f32.xlu0 %v969
    %v971 = vpop.xlane.xlu0 %970
    %v972 = vsel %vm881, %v790, -inf
    %973 = vmax.xlane.f32.xlu0 %v972
    %v974 = vpop.xlane.xlu0 %973
    %v975 = vsel %vm881, %v792, -inf
    %976 = vmax.xlane.f32.xlu0 %v975
    %v977 = vpop.xlane.xlu0 %976
    %v978 = vsel %vm881, %v794, -inf
    %979 = vmax.xlane.f32.xlu0 %v978
    %v980 = vpop.xlane.xlu0 %979
    %v981 = vsel %vm881, %v796, -inf
    %982 = vmax.xlane.f32.xlu0 %v981
    %v983 = vpop.xlane.xlu0 %982
    %v984 = vsel %vm881, %v798, -inf
    %985 = vmax.xlane.f32.xlu0 %v984
    %v986 = vpop.xlane.xlu0 %985
    %v987 = vsel %vm881, %v872, -inf
    %988 = vmax.xlane.f32.xlu0 %v987
    %v989 = vpop.xlane.xlu0 %988
    %v990 = vsel %vm881, %v874, -inf
    %991 = vmax.xlane.f32.xlu0 %v990
    %v992 = vpop.xlane.xlu0 %991
    %v993 = vsel %vm881, %v876, -inf
    %994 = vmax.xlane.f32.xlu0 %v993
    %v995 = vpop.xlane.xlu0 %994
    %v996 = vsel %vm881, %v878, -inf
    %997 = vmax.xlane.f32.xlu0 %v996
    %v998 = vpop.xlane.xlu0 %997
    %v999 = vsel %vm881, %v880, -inf
    %1000 = vmax.xlane.f32.xlu0 %v999
    %v1001 = vpop.xlane.xlu0 %1000
    %v1002 = vld [vmem:[#allocation2 + $0xf] sm:$0x1]
    %v1003 = vld [vmem:[#allocation2 + $0x1f] sm:$0x1]
    %v1004 = vld [vmem:[#allocation2 + $0x2f] sm:$0x1]
    %v1005 = vld [vmem:[#allocation2 + $0x3f] sm:$0x1]
    %v1006 = vld [vmem:[#allocation2 + $0x4f] sm:$0x1]
    %v1007 = vld [vmem:[#allocation2 + $0x5f] sm:$0x1]
    %v1008 = vld [vmem:[#allocation2 + $0x6f] sm:$0x1]
    %v1009 = vld [vmem:[#allocation2 + $0x7f] sm:$0x1]
    %v1010 = vsel %vm87, %v1002, -inf
    %v1011 = vsel %vm87, %v1003, -inf
    %v1012 = vsel %vm87, %v1004, -inf
    %v1013 = vsel %vm87, %v1005, -inf
    %v1014 = vsel %vm87, %v1006, -inf
    %v1015 = vsel %vm87, %v1007, -inf
    %v1016 = vsel %vm87, %v1008, -inf
    %v1017 = vsel %vm87, %v1009, -inf
    %1026 = vrot.lane.b32.xlu0 %v1010, 125
    %v1027 = vpop.permute.xlu0 %1026
    %1028 = vrot.lane.b32.xlu0 %v1011, 125
    %v1029 = vpop.permute.xlu0 %1028
    %1030 = vrot.lane.b32.xlu0 %v1012, 125
    %v1031 = vpop.permute.xlu0 %1030
    %1032 = vrot.lane.b32.xlu0 %v1013, 125
    %v1033 = vpop.permute.xlu0 %1032
    %1034 = vrot.lane.b32.xlu0 %v1014, 125
    %v1035 = vpop.permute.xlu0 %1034
    %1036 = vrot.lane.b32.xlu0 %v1015, 125
    %v1037 = vpop.permute.xlu0 %1036
    %1038 = vrot.lane.b32.xlu0 %v1016, 125
    %v1039 = vpop.permute.xlu0 %1038
    %1040 = vrot.lane.b32.xlu0 %v1017, 125
    %v1041 = vpop.permute.xlu0 %1040
    %1050 = vrot.lane.b32.xlu0 %v1010, 122
    %v1051 = vpop.permute.xlu0 %1050
    %1052 = vrot.lane.b32.xlu0 %v1011, 122
    %v1053 = vpop.permute.xlu0 %1052
    %1054 = vrot.lane.b32.xlu0 %v1012, 122
    %v1055 = vpop.permute.xlu0 %1054
    %1056 = vrot.lane.b32.xlu0 %v1013, 122
    %v1057 = vpop.permute.xlu0 %1056
    %1058 = vrot.lane.b32.xlu0 %v1014, 122
    %v1059 = vpop.permute.xlu0 %1058
    %1060 = vrot.lane.b32.xlu0 %v1015, 122
    %v1061 = vpop.permute.xlu0 %1060
    %1062 = vrot.lane.b32.xlu0 %v1016, 122
    %v1063 = vpop.permute.xlu0 %1062
    %1064 = vrot.lane.b32.xlu0 %v1017, 122
    %v1065 = vpop.permute.xlu0 %1064
    %1074 = vrot.lane.b32.xlu0 %v1010, 119
    %v1075 = vpop.permute.xlu0 %1074
    %1076 = vrot.lane.b32.xlu0 %v1011, 119
    %v1077 = vpop.permute.xlu0 %1076
    %1078 = vrot.lane.b32.xlu0 %v1012, 119
    %v1079 = vpop.permute.xlu0 %1078
    %1080 = vrot.lane.b32.xlu0 %v1013, 119
    %v1081 = vpop.permute.xlu0 %1080
    %1082 = vrot.lane.b32.xlu0 %v1014, 119
    %v1083 = vpop.permute.xlu0 %1082
    %1084 = vrot.lane.b32.xlu0 %v1015, 119
    %v1085 = vpop.permute.xlu0 %1084
    %1086 = vrot.lane.b32.xlu0 %v1016, 119
    %v1087 = vpop.permute.xlu0 %1086
    %1088 = vrot.lane.b32.xlu0 %v1017, 119
    %v1089 = vpop.permute.xlu0 %1088
    %1098 = vrot.lane.b32.xlu0 %v1010, 116
    %v1099 = vpop.permute.xlu0 %1098
    %1100 = vrot.lane.b32.xlu0 %v1011, 116
    %v1101 = vpop.permute.xlu0 %1100
    %1102 = vrot.lane.b32.xlu0 %v1012, 116
    %v1103 = vpop.permute.xlu0 %1102
    %1104 = vrot.lane.b32.xlu0 %v1013, 116
    %v1105 = vpop.permute.xlu0 %1104
    %1106 = vrot.lane.b32.xlu0 %v1014, 116
    %v1107 = vpop.permute.xlu0 %1106
    %1108 = vrot.lane.b32.xlu0 %v1015, 116
    %v1109 = vpop.permute.xlu0 %1108
    %1110 = vrot.lane.b32.xlu0 %v1016, 116
    %v1111 = vpop.permute.xlu0 %1110
    %1112 = vrot.lane.b32.xlu0 %v1017, 116
    %v1113 = vpop.permute.xlu0 %1112
    %1114 = vrot.lane.b32.xlu0 %v1010, 113
    %v1115 = vpop.permute.xlu0 %1114
    %1116 = vrot.lane.b32.xlu0 %v1011, 113
    %v1117 = vpop.permute.xlu0 %1116
    %1118 = vrot.lane.b32.xlu0 %v1012, 113
    %v1119 = vpop.permute.xlu0 %1118
    %1120 = vrot.lane.b32.xlu0 %v1013, 113
    %v1121 = vpop.permute.xlu0 %1120
    %1122 = vrot.lane.b32.xlu0 %v1014, 113
    %v1123 = vpop.permute.xlu0 %1122
    %1124 = vrot.lane.b32.xlu0 %v1015, 113
    %v1125 = vpop.permute.xlu0 %1124
    %1126 = vrot.lane.b32.xlu0 %v1016, 113
    %v1127 = vpop.permute.xlu0 %1126
    %1128 = vrot.lane.b32.xlu0 %v1017, 113
    %v1129 = vpop.permute.xlu0 %1128
    %v1130 = vrot.slane %v1051, 4
    %v1131 = vsel %vm225, %v1130, %v1010
    %v1133 = vunpack.c.l.s4 1983009808
    %v1134 = vunpack.c.0.s8 %v1133
    %v1135 = vperm.slane %v1131, %v1134
    %v1136 = vrot.slane %v1075, 4
    %v1137 = vsel %vm225, %v1136, %v1027
    %v1139 = vunpack.c.l.s4 1983009808
    %v1140 = vunpack.c.0.s8 %v1139
    %v1141 = vperm.slane %v1137, %v1140
    %v1144 = vrot.slane %v1141, 4
    %v1145 = vsel %vm225, %v1144, %v1135
    %v1147 = vunpack.c.l.s4 1934713408
    %v1148 = vunpack.c.0.s8 %v1147
    %v1149 = vperm.slane %v1145, %v1148
    %v1150 = vrot.slane %v1115, 4
    %v1151 = vsel %vm225, %v1150, %v1099
    %v1153 = vunpack.c.l.s4 1934713408
    %v1154 = vunpack.c.0.s8 %v1153
    %v1155 = vperm.slane %v1151, %v1154
    %v1156 = vrot.slane %v1155, 4
    %v1157 = vsel %vm225, %v1156, %v1149
    %v1158 = vrot.slane %v1053, 4
    %v1159 = vsel %vm225, %v1158, %v1011
    %v1161 = vunpack.c.l.s4 1983009808
    %v1162 = vunpack.c.0.s8 %v1161
    %v1163 = vperm.slane %v1159, %v1162
    %v1164 = vrot.slane %v1077, 4
    %v1165 = vsel %vm225, %v1164, %v1029
    %v1167 = vunpack.c.l.s4 1983009808
    %v1168 = vunpack.c.0.s8 %v1167
    %v1169 = vperm.slane %v1165, %v1168
    %v1172 = vrot.slane %v1169, 4
    %v1173 = vsel %vm225, %v1172, %v1163
    %v1175 = vunpack.c.l.s4 1934713408
    %v1176 = vunpack.c.0.s8 %v1175
    %v1177 = vperm.slane %v1173, %v1176
    %v1178 = vrot.slane %v1117, 4
    %v1179 = vsel %vm225, %v1178, %v1101
    %v1181 = vunpack.c.l.s4 1934713408
    %v1182 = vunpack.c.0.s8 %v1181
    %v1183 = vperm.slane %v1179, %v1182
    %v1184 = vrot.slane %v1183, 4
    %v1185 = vsel %vm225, %v1184, %v1177
    %v1186 = vrot.slane %v1055, 4
    %v1187 = vsel %vm225, %v1186, %v1012
    %v1189 = vunpack.c.l.s4 1983009808
    %v1190 = vunpack.c.0.s8 %v1189
    %v1191 = vperm.slane %v1187, %v1190
    %v1192 = vrot.slane %v1079, 4
    %v1193 = vsel %vm225, %v1192, %v1031
    %v1195 = vunpack.c.l.s4 1983009808
    %v1196 = vunpack.c.0.s8 %v1195
    %v1197 = vperm.slane %v1193, %v1196
    %v1200 = vrot.slane %v1197, 4
    %v1201 = vsel %vm225, %v1200, %v1191
    %v1203 = vunpack.c.l.s4 1934713408
    %v1204 = vunpack.c.0.s8 %v1203
    %v1205 = vperm.slane %v1201, %v1204
    %v1206 = vrot.slane %v1119, 4
    %v1207 = vsel %vm225, %v1206, %v1103
    %v1209 = vunpack.c.l.s4 1934713408
    %v1210 = vunpack.c.0.s8 %v1209
    %v1211 = vperm.slane %v1207, %v1210
    %v1212 = vrot.slane %v1211, 4
    %v1213 = vsel %vm225, %v1212, %v1205
    %v1214 = vrot.slane %v1057, 4
    %v1215 = vsel %vm225, %v1214, %v1013
    %v1217 = vunpack.c.l.s4 1983009808
    %v1218 = vunpack.c.0.s8 %v1217
    %v1219 = vperm.slane %v1215, %v1218
    %v1220 = vrot.slane %v1081, 4
    %v1221 = vsel %vm225, %v1220, %v1033
    %v1223 = vunpack.c.l.s4 1983009808
    %v1224 = vunpack.c.0.s8 %v1223
    %v1225 = vperm.slane %v1221, %v1224
    %v1228 = vrot.slane %v1225, 4
    %v1229 = vsel %vm225, %v1228, %v1219
    %v1231 = vunpack.c.l.s4 1934713408
    %v1232 = vunpack.c.0.s8 %v1231
    %v1233 = vperm.slane %v1229, %v1232
    %v1234 = vrot.slane %v1121, 4
    %v1235 = vsel %vm225, %v1234, %v1105
    %v1237 = vunpack.c.l.s4 1934713408
    %v1238 = vunpack.c.0.s8 %v1237
    %v1239 = vperm.slane %v1235, %v1238
    %v1240 = vrot.slane %v1239, 4
    %v1241 = vsel %vm225, %v1240, %v1233
    %v1242 = vrot.slane %v1059, 4
    %v1243 = vsel %vm225, %v1242, %v1014
    %v1245 = vunpack.c.l.s4 1983009808
    %v1246 = vunpack.c.0.s8 %v1245
    %v1247 = vperm.slane %v1243, %v1246
    %v1248 = vrot.slane %v1083, 4
    %v1249 = vsel %vm225, %v1248, %v1035
    %v1251 = vunpack.c.l.s4 1983009808
    %v1252 = vunpack.c.0.s8 %v1251
    %v1253 = vperm.slane %v1249, %v1252
    %v1256 = vrot.slane %v1253, 4
    %v1257 = vsel %vm225, %v1256, %v1247
    %v1259 = vunpack.c.l.s4 1934713408
    %v1260 = vunpack.c.0.s8 %v1259
    %v1261 = vperm.slane %v1257, %v1260
    %v1262 = vrot.slane %v1123, 4
    %v1263 = vsel %vm225, %v1262, %v1107
    %v1265 = vunpack.c.l.s4 1934713408
    %v1266 = vunpack.c.0.s8 %v1265
    %v1267 = vperm.slane %v1263, %v1266
    %v1268 = vrot.slane %v1267, 4
    %v1269 = vsel %vm225, %v1268, %v1261
    %v1270 = vrot.slane %v1061, 4
    %v1271 = vsel %vm225, %v1270, %v1015
    %v1273 = vunpack.c.l.s4 1983009808
    %v1274 = vunpack.c.0.s8 %v1273
    %v1275 = vperm.slane %v1271, %v1274
    %v1276 = vrot.slane %v1085, 4
    %v1277 = vsel %vm225, %v1276, %v1037
    %v1279 = vunpack.c.l.s4 1983009808
    %v1280 = vunpack.c.0.s8 %v1279
    %v1281 = vperm.slane %v1277, %v1280
    %v1284 = vrot.slane %v1281, 4
    %v1285 = vsel %vm225, %v1284, %v1275
    %v1287 = vunpack.c.l.s4 1934713408
    %v1288 = vunpack.c.0.s8 %v1287
    %v1289 = vperm.slane %v1285, %v1288
    %v1290 = vrot.slane %v1125, 4
    %v1291 = vsel %vm225, %v1290, %v1109
    %v1293 = vunpack.c.l.s4 1934713408
    %v1294 = vunpack.c.0.s8 %v1293
    %v1295 = vperm.slane %v1291, %v1294
    %v1296 = vrot.slane %v1295, 4
    %v1297 = vsel %vm225, %v1296, %v1289
    %v1298 = vrot.slane %v1063, 4
    %v1299 = vsel %vm225, %v1298, %v1016
    %v1301 = vunpack.c.l.s4 1983009808
    %v1302 = vunpack.c.0.s8 %v1301
    %v1303 = vperm.slane %v1299, %v1302
    %v1304 = vrot.slane %v1087, 4
    %v1305 = vsel %vm225, %v1304, %v1039
    %v1307 = vunpack.c.l.s4 1983009808
    %v1308 = vunpack.c.0.s8 %v1307
    %v1309 = vperm.slane %v1305, %v1308
    %v1312 = vrot.slane %v1309, 4
    %v1313 = vsel %vm225, %v1312, %v1303
    %v1315 = vunpack.c.l.s4 1934713408
    %v1316 = vunpack.c.0.s8 %v1315
    %v1317 = vperm.slane %v1313, %v1316
    %v1318 = vrot.slane %v1127, 4
    %v1319 = vsel %vm225, %v1318, %v1111
    %v1321 = vunpack.c.l.s4 1934713408
    %v1322 = vunpack.c.0.s8 %v1321
    %v1323 = vperm.slane %v1319, %v1322
    %v1324 = vrot.slane %v1323, 4
    %v1325 = vsel %vm225, %v1324, %v1317
    %v1326 = vrot.slane %v1065, 4
    %v1327 = vsel %vm225, %v1326, %v1017
    %v1329 = vunpack.c.l.s4 1983009808
    %v1330 = vunpack.c.0.s8 %v1329
    %v1331 = vperm.slane %v1327, %v1330
    %v1332 = vrot.slane %v1089, 4
    %v1333 = vsel %vm225, %v1332, %v1041
    %v1335 = vunpack.c.l.s4 1983009808
    %v1336 = vunpack.c.0.s8 %v1335
    %v1337 = vperm.slane %v1333, %v1336
    %v1340 = vrot.slane %v1337, 4
    %v1341 = vsel %vm225, %v1340, %v1331
    %v1343 = vunpack.c.l.s4 1934713408
    %v1344 = vunpack.c.0.s8 %v1343
    %v1345 = vperm.slane %v1341, %v1344
    %v1346 = vrot.slane %v1129, 4
    %v1347 = vsel %vm225, %v1346, %v1113
    %v1349 = vunpack.c.l.s4 1934713408
    %v1350 = vunpack.c.0.s8 %v1349
    %v1351 = vperm.slane %v1347, %v1350
    %v1352 = vrot.slane %v1351, 4
    %v1353 = vsel %vm225, %v1352, %v1345
    %v1354 = vsel %vm881, %v1157, -inf
    %1355 = vmax.xlane.f32.xlu0 %v1354
    %v1356 = vpop.xlane.xlu0 %1355
    %v1357 = vsel %vm881, %v1185, -inf
    %1358 = vmax.xlane.f32.xlu0 %v1357
    %v1359 = vpop.xlane.xlu0 %1358
    %v1360 = vsel %vm881, %v1213, -inf
    %1361 = vmax.xlane.f32.xlu0 %v1360
    %v1362 = vpop.xlane.xlu0 %1361
    %v1363 = vsel %vm881, %v1241, -inf
    %1364 = vmax.xlane.f32.xlu0 %v1363
    %v1365 = vpop.xlane.xlu0 %1364
    %v1366 = vsel %vm881, %v1269, -inf
    %1367 = vmax.xlane.f32.xlu0 %v1366
    %v1368 = vpop.xlane.xlu0 %1367
    %v1369 = vsel %vm881, %v1297, -inf
    %1370 = vmax.xlane.f32.xlu0 %v1369
    %v1371 = vpop.xlane.xlu0 %1370
    %v1372 = vsel %vm881, %v1325, -inf
    %1373 = vmax.xlane.f32.xlu0 %v1372
    %v1374 = vpop.xlane.xlu0 %1373
    %v1375 = vsel %vm881, %v1353, -inf
    %1376 = vmax.xlane.f32.xlu0 %v1375
    %v1377 = vpop.xlane.xlu0 %1376
    %v1418 = vlaneseq
    %v1419 = vand.u32 %v1418, 127
    %v1420 = vperm.slane %v884, %v1419
    %v1421 = vperm.slane %v887, %v1419
    %v1422 = vperm.slane %v890, %v1419
    %v1423 = vperm.slane %v893, %v1419
    %v1424 = vperm.slane %v896, %v1419
    %v1425 = vperm.slane %v899, %v1419
    %v1426 = vperm.slane %v902, %v1419
    %v1427 = vperm.slane %v905, %v1419
    %v1428 = vperm.slane %v908, %v1419
    %v1429 = vperm.slane %v911, %v1419
    %v1430 = vperm.slane %v914, %v1419
    %v1431 = vperm.slane %v917, %v1419
    %v1432 = vperm.slane %v920, %v1419
    %v1433 = vperm.slane %v923, %v1419
    %v1434 = vperm.slane %v926, %v1419
    %v1435 = vperm.slane %v929, %v1419
    %v1436 = vperm.slane %v932, %v1419
    %v1437 = vperm.slane %v935, %v1419
    %v1438 = vperm.slane %v938, %v1419
    %v1439 = vperm.slane %v941, %v1419
    %v1440 = vperm.slane %v944, %v1419
    %v1441 = vperm.slane %v947, %v1419
    %v1442 = vperm.slane %v950, %v1419
    %v1443 = vperm.slane %v953, %v1419
    %v1444 = vperm.slane %v956, %v1419
    %v1445 = vperm.slane %v959, %v1419
    %v1446 = vperm.slane %v962, %v1419
    %v1447 = vperm.slane %v965, %v1419
    %v1448 = vperm.slane %v968, %v1419
    %v1449 = vperm.slane %v971, %v1419
    %v1450 = vperm.slane %v974, %v1419
    %v1451 = vperm.slane %v977, %v1419
    %v1452 = vperm.slane %v980, %v1419
    %v1453 = vperm.slane %v983, %v1419
    %v1454 = vperm.slane %v986, %v1419
    %v1455 = vperm.slane %v989, %v1419
    %v1456 = vperm.slane %v992, %v1419
    %v1457 = vperm.slane %v995, %v1419
    %v1458 = vperm.slane %v998, %v1419
    %v1459 = vperm.slane %v1001, %v1419
    %vm1460 = vcmask 1041409
    %v1461 = vsel %vm1460, %v1421, %v1420
    %vm1462 = vcmask 1042434
    %v1463 = vsel %vm1462, %v1422, %v1461
    %vm1464 = vcmask 1043459
    %v1465 = vsel %vm1464, %v1423, %v1463
    %vm1466 = vcmask 1044484
    %v1467 = vsel %vm1466, %v1424, %v1465
    %v1468 = vsel %vm1460, %v1426, %v1425
    %v1469 = vsel %vm1462, %v1427, %v1468
    %v1470 = vsel %vm1464, %v1428, %v1469
    %v1471 = vsel %vm1466, %v1429, %v1470
    %v1472 = vsel %vm1460, %v1431, %v1430
    %v1473 = vsel %vm1462, %v1432, %v1472
    %v1474 = vsel %vm1464, %v1433, %v1473
    %v1475 = vsel %vm1466, %v1434, %v1474
    %v1476 = vsel %vm1460, %v1436, %v1435
    %v1477 = vsel %vm1462, %v1437, %v1476
    %v1478 = vsel %vm1464, %v1438, %v1477
    %v1479 = vsel %vm1466, %v1439, %v1478
    %v1480 = vsel %vm1460, %v1441, %v1440
    %v1481 = vsel %vm1462, %v1442, %v1480
    %v1482 = vsel %vm1464, %v1443, %v1481
    %v1483 = vsel %vm1466, %v1444, %v1482
    %v1484 = vsel %vm1460, %v1446, %v1445
    %v1485 = vsel %vm1462, %v1447, %v1484
    %v1486 = vsel %vm1464, %v1448, %v1485
    %v1487 = vsel %vm1466, %v1449, %v1486
    %v1488 = vsel %vm1460, %v1451, %v1450
    %v1489 = vsel %vm1462, %v1452, %v1488
    %v1490 = vsel %vm1464, %v1453, %v1489
    %v1491 = vsel %vm1466, %v1454, %v1490
    %v1492 = vsel %vm1460, %v1456, %v1455
    %v1493 = vsel %vm1462, %v1457, %v1492
    %v1494 = vsel %vm1464, %v1458, %v1493
    %v1495 = vsel %vm1466, %v1459, %v1494
    %v1512 = vperm.slane %v1356, %v1419
    %v1513 = vperm.slane %v1359, %v1419
    %v1514 = vperm.slane %v1362, %v1419
    %v1515 = vperm.slane %v1365, %v1419
    %v1516 = vperm.slane %v1368, %v1419
    %v1517 = vperm.slane %v1371, %v1419
    %v1518 = vperm.slane %v1374, %v1419
    %v1519 = vperm.slane %v1377, %v1419
    %vm1528 = vcmask 1044480
    %v1529 = vsel %vm1528, %v1467, %v1512
    %v1530 = vsel %vm1528, %v1471, %v1513
    %v1531 = vsel %vm1528, %v1475, %v1514
    %v1532 = vsel %vm1528, %v1479, %v1515
    %v1533 = vsel %vm1528, %v1483, %v1516
    %v1534 = vsel %vm1528, %v1487, %v1517
    %v1535 = vsel %vm1528, %v1491, %v1518
    %v1536 = vsel %vm1528, %v1495, %v1519
    %vm1537 = vcmask 46080
    %1538 = vst.msk [vmem:[%s1] sm:$0x3f] %vm1537, %v1529
    %1539 = vst.msk [vmem:[%s1 + $0x8] sm:$0x3f] %vm1537, %v1530
    %1540 = vst.msk [vmem:[%s1 + $0x10] sm:$0x3f] %vm1537, %v1531
    %1541 = vst.msk [vmem:[%s1 + $0x18] sm:$0x3f] %vm1537, %v1532
    %1542 = vst.msk [vmem:[%s1 + $0x20] sm:$0x3f] %vm1537, %v1533
    %1543 = vst.msk [vmem:[%s1 + $0x28] sm:$0x3f] %vm1537, %v1534
    %1544 = vst.msk [vmem:[%s1 + $0x30] sm:$0x3f] %vm1537, %v1535
    %1545 = vst.msk [vmem:[%s1 + $0x38] sm:$0x3f] %vm1537, %v1536
    // Predicated region
    $region10: #{maxpool2d_k3_ceil.1} parent=1 // pred_check
      _
    $region11: #{maxpool2d_k3_ceil.1} parent=1 // pred_check_branch
      %1547 = sbr.rel (0) target = $region13
    $region12: #{maxpool2d_k3_ceil.1} parent=1 // pred_region
      _
    $region13: #{maxpool2d_k3_ceil.1} parent=1 // pred_fallthru
      _
    // Predicated region
    $region14: #{maxpool2d_k3_ceil.1} parent=1 // pred_check
      _
    $region15: #{maxpool2d_k3_ceil.1} parent=1 // pred_check_branch
      %1549 = sbr.rel (0) target = $region17
    $region16: #{maxpool2d_k3_ceil.1} parent=1 // pred_region
      _
    $region17: #{maxpool2d_k3_ceil.1} parent=1 // pred_fallthru
      _
    %1550 = vsyncpa [#allocation3], 1

</llo_original>
